<compile_context>
chip_gen: v6e
topology: v6e:2x2x1
jax: 0.10.0
libtpu: 0.0.40
codegen_flags: <defaults>
</compile_context>

<pallas_src>
import math

import jax
import jax.numpy as jnp
from jax.experimental import pallas as pl
from jax.experimental.pallas import tpu as pltpu


def _round_up(x, m):
    return ((x + m - 1) // m) * m


def _mf_kernel(u_ref, v_ref, seg_ref, pred_ref, qu_ref, pi_ref):
    # u_ref / v_ref: (TR, W) packed tiles.  Each lane-row packs ROWS_PER
    # consecutive batch rows of F factors (W = ROWS_PER * F), so loads are
    # fully lane-dense with no transpose anywhere.
    u = u_ref[...]
    v = v_ref[...]
    seg = seg_ref[...]  # (W, ROWS_PER) block-diagonal ones -> segmented row sums on the MXU.
    pred_ref[...] = jnp.dot(u * v, seg, preferred_element_type=jnp.float32)
    qu_ref[...] = jnp.dot(u * u, seg, preferred_element_type=jnp.float32)
    pi_ref[...] = jnp.dot(v * v, seg, preferred_element_type=jnp.float32)


def mf_forward(user_factors, item_factors, user, item, *, max_tile=8192):
    """Pallas implementation of BaseModel.forward.

    Args:
      user_factors: (n_users, F) float32 embedding table.
      item_factors: (n_items, F) float32 embedding table.
      user: (B,) int user indices.
      item: (B,) int item indices.
    Returns:
      (pred, qu, pi), each (B,) float32.
    """
    B = int(user.shape[0])
    F = int(user_factors.shape[1])

    # Pack ROWS_PER batch rows per lane-row so the packed width W = ROWS_PER*F
    # is a multiple of 128 lanes (F=40 -> ROWS_PER=16, W=640).
    rows_per = 128 // math.gcd(F, 128)
    W = rows_per * F
    gran = rows_per * 8  # minimum batch tile: 8 sublanes worth of packed rows.

    b_ceil = _round_up(max(B, 1), gran)
    tb = min(_round_up(max_tile, gran), b_ceil)
    # v7x megacore: keep >= 2 grid steps when the batch is big enough so the
    # "parallel" grid axis can actually be sharded across both TensorCores.
    if tb >= b_ceil and b_ceil >= 2 * gran:
        tb = _round_up(b_ceil // 2, gran)
    b_pad = _round_up(b_ceil, tb)

    # Pad the cheap index vectors (not the gathered matrices). Padded rows use
    # index 0; their outputs are sliced off below.
    u_idx = user.astype(jnp.int32)
    i_idx = item.astype(jnp.int32)
    if b_pad != B:
        u_idx = jnp.pad(u_idx, (0, b_pad - B))
        i_idx = jnp.pad(i_idx, (0, b_pad - B))

    # Embedding gather in plain JAX; the kernel does the fused mul + reduce.
    um = user_factors[u_idx].astype(jnp.float32)  # (b_pad, F)
    im = item_factors[i_idx].astype(jnp.float32)  # (b_pad, F)

    nr = b_pad // rows_per   # packed rows total
    tr = tb // rows_per      # packed rows per tile (multiple of 8)

    # Free, contiguous (row-major) reshapes: no transpose, no extra HBM pass.
    up = um.reshape(nr, W)
    ip = im.reshape(nr, W)

    # Block-diagonal segment-sum matrix: seg[j, b] = 1 iff j // F == b.
    seg = (
        (jnp.arange(W, dtype=jnp.int32)[:, None] // F)
        == jnp.arange(rows_per, dtype=jnp.int32)[None, :]
    ).astype(jnp.float32)

    out_shapes = [jax.ShapeDtypeStruct((nr, rows_per), jnp.float32)] * 3

    pred_p, qu_p, pi_p = pl.pallas_call(
        _mf_kernel,
        out_shape=out_shapes,
        grid=(nr // tr,),
        in_specs=[
            pl.BlockSpec((tr, W), lambda i: (i, 0)),
            pl.BlockSpec((tr, W), lambda i: (i, 0)),
            pl.BlockSpec((W, rows_per), lambda i: (0, 0)),  # same block every step
        ],
        out_specs=[
            pl.BlockSpec((tr, rows_per), lambda i: (i, 0)),
            pl.BlockSpec((tr, rows_per), lambda i: (i, 0)),
            pl.BlockSpec((tr, rows_per), lambda i: (i, 0)),
        ],
        compiler_params=pltpu.CompilerParams(
            dimension_semantics=("parallel",),
        ),
    )(up, ip, seg)

    pred = pred_p.reshape(b_pad)[:B]
    qu = qu_p.reshape(b_pad)[:B]
    pi = pi_p.reshape(b_pad)[:B]
    return pred, qu, pi


class BaseModelPallas:
    """Deterministic parameter container mirroring the PyTorch module."""

    def __init__(self, n_users, n_items, n_factors=40, key=None):
        if key is None:
            key = jax.random.PRNGKey(0)
        k_uf, k_if, k_ub, k_ib = jax.random.split(key, 4)
        self.n_users = n_users
        self.n_items = n_items
        self.n_factors = n_factors
        # torch.nn.init.normal_(std=0.01) equivalents.
        self.user_factors = (
            0.01 * jax.random.normal(k_uf, (n_users, n_factors))
        ).astype(jnp.float32)
        self.item_factors = (
            0.01 * jax.random.normal(k_if, (n_items, n_factors))
        ).astype(jnp.float32)
        # Biases exist in the module but are unused by forward().
        self.user_biases = jax.random.normal(k_ub, (n_users, 1)).astype(jnp.float32)
        self.item_biases = jax.random.normal(k_ib, (n_items, 1)).astype(jnp.float32)

    def forward(self, user, item):
        return mf_forward(self.user_factors, self.item_factors, user, item)

    def predict(self, user, item):
        return self.forward(user, item)


if __name__ == "__main__":
    key = jax.random.PRNGKey(0)
    n_users, n_items, n_factors, batch = 64, 128, 40, 8

    model = BaseModelPallas(n_users, n_items, n_factors, key=key)

    k_u, k_i = jax.random.split(jax.random.PRNGKey(0), 2)
    user = jax.random.randint(k_u, (batch,), 0, n_users, dtype=jnp.int32)
    item = jax.random.randint(k_i, (batch,), 0, n_items, dtype=jnp.int32)

    pred, qu, pi = model.forward(user, item)
    jax.block_until_ready((pred, qu, pi))

    # Pure-JAX reference check.
    um = model.user_factors[user]
    im = model.item_factors[item]
    pred_ref = jnp.sum(um * im, axis=1)
    qu_ref = jnp.sum(um * um, axis=1)
    pi_ref = jnp.sum(im * im, axis=1)

    assert pred.shape == (batch,) and qu.shape == (batch,) and pi.shape == (batch,)
    # Tolerance accounts for the MXU segmented-sum (default f32 dot precision).
    assert jnp.allclose(pred, pred_ref, atol=1e-5, rtol=1e-3)
    assert jnp.allclose(qu, qu_ref, atol=1e-5, rtol=1e-3)
    assert jnp.allclose(pi, pi_ref, atol=1e-5, rtol=1e-3)

    print("KERNEL_OK")
</pallas_src>

<mosaic_0001>
module attributes {stable_mosaic.version = 11 : i64} {
  func.func @_mf_kernel(%arg0: i32, %arg1: memref<8x640xf32, #tpu.memory_space<vmem>>, %arg2: memref<8x640xf32, #tpu.memory_space<vmem>>, %arg3: memref<640x16xf32, #tpu.memory_space<vmem>>, %arg4: memref<8x16xf32, #tpu.memory_space<vmem>>, %arg5: memref<8x16xf32, #tpu.memory_space<vmem>>, %arg6: memref<8x16xf32, #tpu.memory_space<vmem>>) attributes {dimension_semantics = [#tpu.dimension_semantics<parallel>], iteration_bounds = array<i64: 1>, scalar_prefetch = 0 : i64, scratch_operands = 0 : i64, tpu.core_type = #tpu.core_type<tc>, window_params = [{transform_indices = @transform_0, window_bounds = array<i64: 8, 640>}, {transform_indices = @transform_1, window_bounds = array<i64: 8, 640>}, {pipeline_mode = #tpu.pipeline_mode<synchronous>, transform_indices = @transform_2, window_bounds = array<i64: 640, 16>}, {transform_indices = @transform_3, window_bounds = array<i64: 8, 16>}, {transform_indices = @transform_4, window_bounds = array<i64: 8, 16>}, {transform_indices = @transform_5, window_bounds = array<i64: 8, 16>}]} {
    %c0 = arith.constant 0 : index
    %c0_0 = arith.constant 0 : index
    %0 = vector.load %arg1[%c0, %c0_0] : memref<8x640xf32, #tpu.memory_space<vmem>>, vector<8x640xf32>
    %c0_1 = arith.constant 0 : index
    %c0_2 = arith.constant 0 : index
    %1 = vector.load %arg2[%c0_1, %c0_2] : memref<8x640xf32, #tpu.memory_space<vmem>>, vector<8x640xf32>
    %c0_3 = arith.constant 0 : index
    %c0_4 = arith.constant 0 : index
    %2 = vector.load %arg3[%c0_3, %c0_4] : memref<640x16xf32, #tpu.memory_space<vmem>>, vector<640x16xf32>
    %3 = arith.mulf %0, %1 : vector<8x640xf32>
    %cst = arith.constant dense<0.000000e+00> : vector<8x16xf32>
    %4 = tpu.matmul %3, %2, %cst {dimension_numbers = #tpu.dot_dimension_numbers<[1], [0], [0], [1], [0, 0, 1, 1], [], []>} : vector<8x640xf32>, vector<640x16xf32>, vector<8x16xf32> -> vector<8x16xf32>
    %c0_5 = arith.constant 0 : index
    %c0_6 = arith.constant 0 : index
    %5 = vector.load %arg4[%c0_5, %c0_6] : memref<8x16xf32, #tpu.memory_space<vmem>>, vector<8x16xf32>
    tpu.vector_store %arg4[%c0_5, %c0_6], %4 {strides = array<i32>} : memref<8x16xf32, #tpu.memory_space<vmem>>, vector<8x16xf32>,
    %6 = arith.mulf %0, %0 : vector<8x640xf32>
    %cst_7 = arith.constant dense<0.000000e+00> : vector<8x16xf32>
    %7 = tpu.matmul %6, %2, %cst_7 {dimension_numbers = #tpu.dot_dimension_numbers<[1], [0], [0], [1], [0, 0, 1, 1], [], []>} : vector<8x640xf32>, vector<640x16xf32>, vector<8x16xf32> -> vector<8x16xf32>
    %c0_8 = arith.constant 0 : index
    %c0_9 = arith.constant 0 : index
    %8 = vector.load %arg5[%c0_8, %c0_9] : memref<8x16xf32, #tpu.memory_space<vmem>>, vector<8x16xf32>
    tpu.vector_store %arg5[%c0_8, %c0_9], %7 {strides = array<i32>} : memref<8x16xf32, #tpu.memory_space<vmem>>, vector<8x16xf32>,
    %9 = arith.mulf %1, %1 : vector<8x640xf32>
    %cst_10 = arith.constant dense<0.000000e+00> : vector<8x16xf32>
    %10 = tpu.matmul %9, %2, %cst_10 {dimension_numbers = #tpu.dot_dimension_numbers<[1], [0], [0], [1], [0, 0, 1, 1], [], []>} : vector<8x640xf32>, vector<640x16xf32>, vector<8x16xf32> -> vector<8x16xf32>
    %c0_11 = arith.constant 0 : index
    %c0_12 = arith.constant 0 : index
    %11 = vector.load %arg6[%c0_11, %c0_12] : memref<8x16xf32, #tpu.memory_space<vmem>>, vector<8x16xf32>
    tpu.vector_store %arg6[%c0_11, %c0_12], %10 {strides = array<i32>} : memref<8x16xf32, #tpu.memory_space<vmem>>, vector<8x16xf32>,
    return
  }
  func.func @transform_0(%arg0: i32) -> (i32, i32) {
    %c0_i32 = arith.constant 0 : i32
    %c0_i32_0 = arith.constant 0 : i32
    return %arg0, %c0_i32 : i32, i32
  }
  func.func @transform_1(%arg0: i32) -> (i32, i32) {
    %c0_i32 = arith.constant 0 : i32
    %c0_i32_0 = arith.constant 0 : i32
    return %arg0, %c0_i32 : i32, i32
  }
  func.func @transform_2(%arg0: i32) -> (i32, i32) {
    %c0_i32 = arith.constant 0 : i32
    %c0_i32_0 = arith.constant 0 : i32
    %c0_i32_1 = arith.constant 0 : i32
    return %c0_i32, %c0_i32_0 : i32, i32
  }
  func.func @transform_3(%arg0: i32) -> (i32, i32) {
    %c0_i32 = arith.constant 0 : i32
    %c0_i32_0 = arith.constant 0 : i32
    return %arg0, %c0_i32 : i32, i32
  }
  func.func @transform_4(%arg0: i32) -> (i32, i32) {
    %c0_i32 = arith.constant 0 : i32
    %c0_i32_0 = arith.constant 0 : i32
    return %arg0, %c0_i32 : i32, i32
  }
  func.func @transform_5(%arg0: i32) -> (i32, i32) {
    %c0_i32 = arith.constant 0 : i32
    %c0_i32_0 = arith.constant 0 : i32
    return %arg0, %c0_i32 : i32, i32
  }
}

</mosaic_0001>

<llo_original>
// kernel: tpu_custom_call.1
$region0: #{tpu_custom_call.1}
  #allocation0 [shape = 'u32[]', space=smem, size = 0x4, offset = 0x4, fixed_abs, tag = 'smem constant byte address 0x4 - core index']
  #allocation1 [shape = 'u32[144,128]{1,0:T(1,128)}', space=vmem, size = 0x12000, scoped, tag = 'internal scratch']
  %s0 = inlined_call_operand.vmem [shape: f32[8,640], index: 0, kind: input, shape index: {}]
  %s1 = inlined_call_operand.vmem [shape: f32[8,640], index: 1, kind: input, shape index: {}]
  %s2 = inlined_call_operand.vmem [shape: f32[640,16], index: 2, kind: input, shape index: {}]
  %s3 = inlined_call_operand.hbm [shape: f32[8,16], index: 3, kind: output, shape index: {0}]
  %s4 = inlined_call_operand.hbm [shape: f32[8,16], index: 4, kind: output, shape index: {1}]
  %s5 = inlined_call_operand.hbm [shape: f32[8,16], index: 5, kind: output, shape index: {2}]
  %6 = xla_tuple %s3, %s4, %s5
  %s7 = sld [smem:[#allocation0]]
  $region38: #{tpu_custom_call.1} parent=0
    _
  %s9 = ssub.s32 1, %s7
  %s10 = scalar_select 0, %s9, %s7
  $region1: #{tpu_custom_call.1} parent=0
    #allocation2 [shape = 'u8[4096]{0}', space=vmem, size = 0x1000, scoped, tag = 'output window, operand 0, single buffered']
    #allocation3 [shape = 's32[1]{0}', space=sflag, size = 0x4, scoped, tag = 'scoped memory for tpu_custom_call.1']
    #allocation4 [shape = 'u8[4096]{0}', space=vmem, size = 0x1000, scoped, tag = 'output window, operand 1, single buffered']
    #allocation5 [shape = 's32[1]{0}', space=sflag, size = 0x4, scoped, tag = 'scoped memory for tpu_custom_call.1']
    #allocation6 [shape = 'u8[4096]{0}', space=vmem, size = 0x1000, scoped, tag = 'output window, operand 2, single buffered']
    %11 = vsyncpa [#allocation3], 0
    %12 = vsyncpa [#allocation5], 0
    // Predicated region
    $region2: #{tpu_custom_call.1} parent=1 // pred_check
      _
    $region3: #{tpu_custom_call.1} parent=1 // pred_check_branch
      %14 = sbr.rel (0) target = $region5
    $region4: #{tpu_custom_call.1} parent=1 // pred_region
      _
    $region5: #{tpu_custom_call.1} parent=1 // pred_fallthru
      _
    // Predicated region
    $region6: #{tpu_custom_call.1} parent=1 // pred_check
      _
    $region7: #{tpu_custom_call.1} parent=1 // pred_check_branch
      %16 = sbr.rel (0) target = $region9
    $region8: #{tpu_custom_call.1} parent=1 // pred_region
      _
    $region9: #{tpu_custom_call.1} parent=1 // pred_fallthru
      _
    // Predicated region
    $region10: #{tpu_custom_call.1} parent=1 // pred_check
      _
    $region11: #{tpu_custom_call.1} parent=1 // pred_check_branch
      %18 = sbr.rel (0) target = $region13
    $region12: #{tpu_custom_call.1} parent=1 // pred_region
      _
    $region13: #{tpu_custom_call.1} parent=1 // pred_fallthru
      _
    %v19 = vld [vmem:[%s0] sm:$0xff]
    %v20 = vld [vmem:[%s0 + $0x8] sm:$0xff]
    %v21 = vld [vmem:[%s0 + $0x10] sm:$0xff]
    %v22 = vld [vmem:[%s0 + $0x18] sm:$0xff]
    %v23 = vld [vmem:[%s0 + $0x20] sm:$0xff]
    %v24 = vld [vmem:[%s1] sm:$0xff]
    %v25 = vld [vmem:[%s1 + $0x8] sm:$0xff]
    %v26 = vld [vmem:[%s1 + $0x10] sm:$0xff]
    %v27 = vld [vmem:[%s1 + $0x18] sm:$0xff]
    %v28 = vld [vmem:[%s1 + $0x20] sm:$0xff]
    %v29 = vld [vmem:[%s2] sm:$0xff]
    %v30 = vld [vmem:[%s2 + $0x8] sm:$0xff]
    %v31 = vld [vmem:[%s2 + $0x10] sm:$0xff]
    %v32 = vld [vmem:[%s2 + $0x18] sm:$0xff]
    %v33 = vld [vmem:[%s2 + $0x20] sm:$0xff]
    %v34 = vld [vmem:[%s2 + $0x28] sm:$0xff]
    %v35 = vld [vmem:[%s2 + $0x30] sm:$0xff]
    %v36 = vld [vmem:[%s2 + $0x38] sm:$0xff]
    %v37 = vld [vmem:[%s2 + $0x40] sm:$0xff]
    %v38 = vld [vmem:[%s2 + $0x48] sm:$0xff]
    %v39 = vld [vmem:[%s2 + $0x50] sm:$0xff]
    %v40 = vld [vmem:[%s2 + $0x58] sm:$0xff]
    %v41 = vld [vmem:[%s2 + $0x60] sm:$0xff]
    %v42 = vld [vmem:[%s2 + $0x68] sm:$0xff]
    %v43 = vld [vmem:[%s2 + $0x70] sm:$0xff]
    %v44 = vld [vmem:[%s2 + $0x78] sm:$0xff]
    %v45 = vld [vmem:[%s2 + $0x80] sm:$0xff]
    %v46 = vld [vmem:[%s2 + $0x88] sm:$0xff]
    %v47 = vld [vmem:[%s2 + $0x90] sm:$0xff]
    %v48 = vld [vmem:[%s2 + $0x98] sm:$0xff]
    %v49 = vld [vmem:[%s2 + $0xa0] sm:$0xff]
    %v50 = vld [vmem:[%s2 + $0xa8] sm:$0xff]
    %v51 = vld [vmem:[%s2 + $0xb0] sm:$0xff]
    %v52 = vld [vmem:[%s2 + $0xb8] sm:$0xff]
    %v53 = vld [vmem:[%s2 + $0xc0] sm:$0xff]
    %v54 = vld [vmem:[%s2 + $0xc8] sm:$0xff]
    %v55 = vld [vmem:[%s2 + $0xd0] sm:$0xff]
    %v56 = vld [vmem:[%s2 + $0xd8] sm:$0xff]
    %v57 = vld [vmem:[%s2 + $0xe0] sm:$0xff]
    %v58 = vld [vmem:[%s2 + $0xe8] sm:$0xff]
    %v59 = vld [vmem:[%s2 + $0xf0] sm:$0xff]
    %v60 = vld [vmem:[%s2 + $0xf8] sm:$0xff]
    %v61 = vld [vmem:[%s2 + $0x100] sm:$0xff]
    %v62 = vld [vmem:[%s2 + $0x108] sm:$0xff]
    %v63 = vld [vmem:[%s2 + $0x110] sm:$0xff]
    %v64 = vld [vmem:[%s2 + $0x118] sm:$0xff]
    %v65 = vld [vmem:[%s2 + $0x120] sm:$0xff]
    %v66 = vld [vmem:[%s2 + $0x128] sm:$0xff]
    %v67 = vld [vmem:[%s2 + $0x130] sm:$0xff]
    %v68 = vld [vmem:[%s2 + $0x138] sm:$0xff]
    %v69 = vld [vmem:[%s2 + $0x140] sm:$0xff]
    %v70 = vld [vmem:[%s2 + $0x148] sm:$0xff]
    %v71 = vld [vmem:[%s2 + $0x150] sm:$0xff]
    %v72 = vld [vmem:[%s2 + $0x158] sm:$0xff]
    %v73 = vld [vmem:[%s2 + $0x160] sm:$0xff]
    %v74 = vld [vmem:[%s2 + $0x168] sm:$0xff]
    %v75 = vld [vmem:[%s2 + $0x170] sm:$0xff]
    %v76 = vld [vmem:[%s2 + $0x178] sm:$0xff]
    %v77 = vld [vmem:[%s2 + $0x180] sm:$0xff]
    %v78 = vld [vmem:[%s2 + $0x188] sm:$0xff]
    %v79 = vld [vmem:[%s2 + $0x190] sm:$0xff]
    %v80 = vld [vmem:[%s2 + $0x198] sm:$0xff]
    %v81 = vld [vmem:[%s2 + $0x1a0] sm:$0xff]
    %v82 = vld [vmem:[%s2 + $0x1a8] sm:$0xff]
    %v83 = vld [vmem:[%s2 + $0x1b0] sm:$0xff]
    %v84 = vld [vmem:[%s2 + $0x1b8] sm:$0xff]
    %v85 = vld [vmem:[%s2 + $0x1c0] sm:$0xff]
    %v86 = vld [vmem:[%s2 + $0x1c8] sm:$0xff]
    %v87 = vld [vmem:[%s2 + $0x1d0] sm:$0xff]
    %v88 = vld [vmem:[%s2 + $0x1d8] sm:$0xff]
    %v89 = vld [vmem:[%s2 + $0x1e0] sm:$0xff]
    %v90 = vld [vmem:[%s2 + $0x1e8] sm:$0xff]
    %v91 = vld [vmem:[%s2 + $0x1f0] sm:$0xff]
    %v92 = vld [vmem:[%s2 + $0x1f8] sm:$0xff]
    %v93 = vld [vmem:[%s2 + $0x200] sm:$0xff]
    %v94 = vld [vmem:[%s2 + $0x208] sm:$0xff]
    %v95 = vld [vmem:[%s2 + $0x210] sm:$0xff]
    %v96 = vld [vmem:[%s2 + $0x218] sm:$0xff]
    %v97 = vld [vmem:[%s2 + $0x220] sm:$0xff]
    %v98 = vld [vmem:[%s2 + $0x228] sm:$0xff]
    %v99 = vld [vmem:[%s2 + $0x230] sm:$0xff]
    %v100 = vld [vmem:[%s2 + $0x238] sm:$0xff]
    %v101 = vld [vmem:[%s2 + $0x240] sm:$0xff]
    %v102 = vld [vmem:[%s2 + $0x248] sm:$0xff]
    %v103 = vld [vmem:[%s2 + $0x250] sm:$0xff]
    %v104 = vld [vmem:[%s2 + $0x258] sm:$0xff]
    %v105 = vld [vmem:[%s2 + $0x260] sm:$0xff]
    %v106 = vld [vmem:[%s2 + $0x268] sm:$0xff]
    %v107 = vld [vmem:[%s2 + $0x270] sm:$0xff]
    %v108 = vld [vmem:[%s2 + $0x278] sm:$0xff]
    %v109 = vmul.f32 %v19, %v24
    %v110 = vmul.f32 %v20, %v25
    %v111 = vmul.f32 %v21, %v26
    %v112 = vmul.f32 %v22, %v27
    %v113 = vmul.f32 %v23, %v28
    %114 = vmatprep.subr.mxu0 0.0
    %115 = vmatpush1.msra.mxu0 %v44
    %116 = vmatprep.subr.mxu0 0.0
    %117 = vmatpush1.msra.mxu0 %v43
    %118 = vmatprep.subr.mxu0 0.0
    %119 = vmatpush1.msra.mxu0 %v42
    %120 = vmatprep.subr.mxu0 0.0
    %121 = vmatpush1.msra.mxu0 %v41
    %122 = vmatprep.subr.mxu0 0.0
    %123 = vmatpush1.msra.mxu0 %v40
    %124 = vmatprep.subr.mxu0 0.0
    %125 = vmatpush1.msra.mxu0 %v39
    %126 = vmatprep.subr.mxu0 0.0
    %127 = vmatpush1.msra.mxu0 %v38
    %128 = vmatprep.subr.mxu0 0.0
    %129 = vmatpush1.msra.mxu0 %v37
    %130 = vmatprep.subr.mxu0 0.0
    %131 = vmatpush1.msra.mxu0 %v36
    %132 = vmatprep.subr.mxu0 0.0
    %133 = vmatpush1.msra.mxu0 %v35
    %134 = vmatprep.subr.mxu0 0.0
    %135 = vmatpush1.msra.mxu0 %v34
    %136 = vmatprep.subr.mxu0 0.0
    %137 = vmatpush1.msra.mxu0 %v33
    %138 = vmatprep.subr.mxu0 0.0
    %139 = vmatpush1.msra.mxu0 %v32
    %140 = vmatprep.subr.mxu0 0.0
    %141 = vmatpush1.msra.mxu0 %v31
    %142 = vmatprep.subr.mxu0 0.0
    %143 = vmatpush1.msra.mxu0 %v30
    %144 = vmatprep.subr.mxu0 0.0
    %145 = vmatpush1.msra.mxu0 %v29
    %146 = vmatprep.subr.mxu0 0.0
    %147 = vmatpush2.msra.mxu0 %v60
    %148 = vmatprep.subr.mxu0 0.0
    %149 = vmatpush2.msra.mxu0 %v59
    %150 = vmatprep.subr.mxu0 0.0
    %151 = vmatpush2.msra.mxu0 %v58
    %152 = vmatprep.subr.mxu0 0.0
    %153 = vmatpush2.msra.mxu0 %v57
    %154 = vmatprep.subr.mxu0 0.0
    %155 = vmatpush2.msra.mxu0 %v56
    %156 = vmatprep.subr.mxu0 0.0
    %157 = vmatpush2.msra.mxu0 %v55
    %158 = vmatprep.subr.mxu0 0.0
    %159 = vmatpush2.msra.mxu0 %v54
    %160 = vmatprep.subr.mxu0 0.0
    %161 = vmatpush2.msra.mxu0 %v53
    %162 = vmatprep.subr.mxu0 0.0
    %163 = vmatpush2.msra.mxu0 %v52
    %164 = vmatprep.subr.mxu0 0.0
    %165 = vmatpush2.msra.mxu0 %v51
    %166 = vmatprep.subr.mxu0 0.0
    %167 = vmatpush2.msra.mxu0 %v50
    %168 = vmatprep.subr.mxu0 0.0
    %169 = vmatpush2.msra.mxu0 %v49
    %170 = vmatprep.subr.mxu0 0.0
    %171 = vmatpush2.msra.mxu0 %v48
    %172 = vmatprep.subr.mxu0 0.0
    %173 = vmatpush2.msra.mxu0 %v47
    %174 = vmatprep.subr.mxu0 0.0
    %175 = vmatpush2.msra.mxu0 %v46
    %176 = vmatprep.subr.mxu0 0.0
    %177 = vmatpush2.msra.mxu0 %v45
    %178 = vmatprep.mubr.f32.mxu0 %v110
    %179 = vmatmul.mubr.f32.gmra.mxu0 %v109
    %v180 = vpop.f32.mrf.mxu0
    %v181 = vadd.f32 0.0, %v180
    %v182 = vpop.f32.mrf.mxu0
    %183 = vdwg.mxu0
    %184 = vmatprep.subr.mxu0 0.0
    %185 = vmatpush1.msra.mxu0 %v76
    %186 = vmatprep.subr.mxu0 0.0
    %187 = vmatpush1.msra.mxu0 %v75
    %188 = vmatprep.subr.mxu0 0.0
    %189 = vmatpush1.msra.mxu0 %v74
    %190 = vmatprep.subr.mxu0 0.0
    %191 = vmatpush1.msra.mxu0 %v73
    %192 = vmatprep.subr.mxu0 0.0
    %193 = vmatpush1.msra.mxu0 %v72
    %194 = vmatprep.subr.mxu0 0.0
    %195 = vmatpush1.msra.mxu0 %v71
    %196 = vmatprep.subr.mxu0 0.0
    %197 = vmatpush1.msra.mxu0 %v70
    %198 = vmatprep.subr.mxu0 0.0
    %199 = vmatpush1.msra.mxu0 %v69
    %200 = vmatprep.subr.mxu0 0.0
    %201 = vmatpush1.msra.mxu0 %v68
    %202 = vmatprep.subr.mxu0 0.0
    %203 = vmatpush1.msra.mxu0 %v67
    %204 = vmatprep.subr.mxu0 0.0
    %205 = vmatpush1.msra.mxu0 %v66
    %206 = vmatprep.subr.mxu0 0.0
    %207 = vmatpush1.msra.mxu0 %v65
    %208 = vmatprep.subr.mxu0 0.0
    %209 = vmatpush1.msra.mxu0 %v64
    %210 = vmatprep.subr.mxu0 0.0
    %211 = vmatpush1.msra.mxu0 %v63
    %212 = vmatprep.subr.mxu0 0.0
    %213 = vmatpush1.msra.mxu0 %v62
    %214 = vmatprep.subr.mxu0 0.0
    %215 = vmatpush1.msra.mxu0 %v61
    %216 = vmatprep.subr.mxu0 0.0
    %217 = vmatpush2.msra.mxu0 %v92
    %218 = vmatprep.subr.mxu0 0.0
    %219 = vmatpush2.msra.mxu0 %v91
    %220 = vmatprep.subr.mxu0 0.0
    %221 = vmatpush2.msra.mxu0 %v90
    %222 = vmatprep.subr.mxu0 0.0
    %223 = vmatpush2.msra.mxu0 %v89
    %224 = vmatprep.subr.mxu0 0.0
    %225 = vmatpush2.msra.mxu0 %v88
    %226 = vmatprep.subr.mxu0 0.0
    %227 = vmatpush2.msra.mxu0 %v87
    %228 = vmatprep.subr.mxu0 0.0
    %229 = vmatpush2.msra.mxu0 %v86
    %230 = vmatprep.subr.mxu0 0.0
    %231 = vmatpush2.msra.mxu0 %v85
    %232 = vmatprep.subr.mxu0 0.0
    %233 = vmatpush2.msra.mxu0 %v84
    %234 = vmatprep.subr.mxu0 0.0
    %235 = vmatpush2.msra.mxu0 %v83
    %236 = vmatprep.subr.mxu0 0.0
    %237 = vmatpush2.msra.mxu0 %v82
    %238 = vmatprep.subr.mxu0 0.0
    %239 = vmatpush2.msra.mxu0 %v81
    %240 = vmatprep.subr.mxu0 0.0
    %241 = vmatpush2.msra.mxu0 %v80
    %242 = vmatprep.subr.mxu0 0.0
    %243 = vmatpush2.msra.mxu0 %v79
    %244 = vmatprep.subr.mxu0 0.0
    %245 = vmatpush2.msra.mxu0 %v78
    %246 = vmatprep.subr.mxu0 0.0
    %247 = vmatpush2.msra.mxu0 %v77
    %248 = vmatprep.mubr.f32.mxu0 %v112
    %249 = vmatmul.mubr.f32.gmra.mxu0 %v111
    %v250 = vpop.f32.mrf.mxu0
    %v251 = vadd.f32 %v181, %v250
    %v252 = vpop.f32.mrf.mxu0
    %253 = vdwg.mxu0
    %254 = vmatprep.subr.mxu0 0.0
    %255 = vmatpush1.msra.mxu0 %v108
    %256 = vmatprep.subr.mxu0 0.0
    %257 = vmatpush1.msra.mxu0 %v107
    %258 = vmatprep.subr.mxu0 0.0
    %259 = vmatpush1.msra.mxu0 %v106
    %260 = vmatprep.subr.mxu0 0.0
    %261 = vmatpush1.msra.mxu0 %v105
    %262 = vmatprep.subr.mxu0 0.0
    %263 = vmatpush1.msra.mxu0 %v104
    %264 = vmatprep.subr.mxu0 0.0
    %265 = vmatpush1.msra.mxu0 %v103
    %266 = vmatprep.subr.mxu0 0.0
    %267 = vmatpush1.msra.mxu0 %v102
    %268 = vmatprep.subr.mxu0 0.0
    %269 = vmatpush1.msra.mxu0 %v101
    %270 = vmatprep.subr.mxu0 0.0
    %271 = vmatpush1.msra.mxu0 %v100
    %272 = vmatprep.subr.mxu0 0.0
    %273 = vmatpush1.msra.mxu0 %v99
    %274 = vmatprep.subr.mxu0 0.0
    %275 = vmatpush1.msra.mxu0 %v98
    %276 = vmatprep.subr.mxu0 0.0
    %277 = vmatpush1.msra.mxu0 %v97
    %278 = vmatprep.subr.mxu0 0.0
    %279 = vmatpush1.msra.mxu0 %v96
    %280 = vmatprep.subr.mxu0 0.0
    %281 = vmatpush1.msra.mxu0 %v95
    %282 = vmatprep.subr.mxu0 0.0
    %283 = vmatpush1.msra.mxu0 %v94
    %284 = vmatprep.subr.mxu0 0.0
    %285 = vmatpush1.msra.mxu0 %v93
    %286 = vmatprep.subr.mxu0 0.0
    %287 = vmatpush2.msra.mxu0 0.0
    %288 = vmatprep.subr.mxu0 0.0
    %289 = vmatpush2.msra.mxu0 0.0
    %290 = vmatprep.subr.mxu0 0.0
    %291 = vmatpush2.msra.mxu0 0.0
    %292 = vmatprep.subr.mxu0 0.0
    %293 = vmatpush2.msra.mxu0 0.0
    %294 = vmatprep.subr.mxu0 0.0
    %295 = vmatpush2.msra.mxu0 0.0
    %296 = vmatprep.subr.mxu0 0.0
    %297 = vmatpush2.msra.mxu0 0.0
    %298 = vmatprep.subr.mxu0 0.0
    %299 = vmatpush2.msra.mxu0 0.0
    %300 = vmatprep.subr.mxu0 0.0
    %301 = vmatpush2.msra.mxu0 0.0
    %302 = vmatprep.subr.mxu0 0.0
    %303 = vmatpush2.msra.mxu0 0.0
    %304 = vmatprep.subr.mxu0 0.0
    %305 = vmatpush2.msra.mxu0 0.0
    %306 = vmatprep.subr.mxu0 0.0
    %307 = vmatpush2.msra.mxu0 0.0
    %308 = vmatprep.subr.mxu0 0.0
    %309 = vmatpush2.msra.mxu0 0.0
    %310 = vmatprep.subr.mxu0 0.0
    %311 = vmatpush2.msra.mxu0 0.0
    %312 = vmatprep.subr.mxu0 0.0
    %313 = vmatpush2.msra.mxu0 0.0
    %314 = vmatprep.subr.mxu0 0.0
    %315 = vmatpush2.msra.mxu0 0.0
    %316 = vmatprep.subr.mxu0 0.0
    %317 = vmatpush2.msra.mxu0 0.0
    %318 = vmatprep.mubr.f32.mxu0 0.0
    %319 = vmatmul.mubr.f32.gmra.mxu0 %v113
    %v320 = vpop.f32.mrf.mxu0
    %v321 = vadd.f32 %v251, %v320
    %v322 = vpop.f32.mrf.mxu0
    %323 = vdwg.mxu0
    %vm324 = vcmask 130048
    %325 = vst.msk [vmem:[#allocation2] sm:$0xff] %vm324, %v321
    %v326 = vmul.f32 %v19, %v19
    %v327 = vmul.f32 %v20, %v20
    %v328 = vmul.f32 %v21, %v21
    %v329 = vmul.f32 %v22, %v22
    %v330 = vmul.f32 %v23, %v23
    %331 = vmatprep.subr.mxu0 0.0
    %332 = vmatpush1.msra.mxu0 %v44
    %333 = vmatprep.subr.mxu0 0.0
    %334 = vmatpush1.msra.mxu0 %v43
    %335 = vmatprep.subr.mxu0 0.0
    %336 = vmatpush1.msra.mxu0 %v42
    %337 = vmatprep.subr.mxu0 0.0
    %338 = vmatpush1.msra.mxu0 %v41
    %339 = vmatprep.subr.mxu0 0.0
    %340 = vmatpush1.msra.mxu0 %v40
    %341 = vmatprep.subr.mxu0 0.0
    %342 = vmatpush1.msra.mxu0 %v39
    %343 = vmatprep.subr.mxu0 0.0
    %344 = vmatpush1.msra.mxu0 %v38
    %345 = vmatprep.subr.mxu0 0.0
    %346 = vmatpush1.msra.mxu0 %v37
    %347 = vmatprep.subr.mxu0 0.0
    %348 = vmatpush1.msra.mxu0 %v36
    %349 = vmatprep.subr.mxu0 0.0
    %350 = vmatpush1.msra.mxu0 %v35
    %351 = vmatprep.subr.mxu0 0.0
    %352 = vmatpush1.msra.mxu0 %v34
    %353 = vmatprep.subr.mxu0 0.0
    %354 = vmatpush1.msra.mxu0 %v33
    %355 = vmatprep.subr.mxu0 0.0
    %356 = vmatpush1.msra.mxu0 %v32
    %357 = vmatprep.subr.mxu0 0.0
    %358 = vmatpush1.msra.mxu0 %v31
    %359 = vmatprep.subr.mxu0 0.0
    %360 = vmatpush1.msra.mxu0 %v30
    %361 = vmatprep.subr.mxu0 0.0
    %362 = vmatpush1.msra.mxu0 %v29
    %363 = vmatprep.subr.mxu0 0.0
    %364 = vmatpush2.msra.mxu0 %v60
    %365 = vmatprep.subr.mxu0 0.0
    %366 = vmatpush2.msra.mxu0 %v59
    %367 = vmatprep.subr.mxu0 0.0
    %368 = vmatpush2.msra.mxu0 %v58
    %369 = vmatprep.subr.mxu0 0.0
    %370 = vmatpush2.msra.mxu0 %v57
    %371 = vmatprep.subr.mxu0 0.0
    %372 = vmatpush2.msra.mxu0 %v56
    %373 = vmatprep.subr.mxu0 0.0
    %374 = vmatpush2.msra.mxu0 %v55
    %375 = vmatprep.subr.mxu0 0.0
    %376 = vmatpush2.msra.mxu0 %v54
    %377 = vmatprep.subr.mxu0 0.0
    %378 = vmatpush2.msra.mxu0 %v53
    %379 = vmatprep.subr.mxu0 0.0
    %380 = vmatpush2.msra.mxu0 %v52
    %381 = vmatprep.subr.mxu0 0.0
    %382 = vmatpush2.msra.mxu0 %v51
    %383 = vmatprep.subr.mxu0 0.0
    %384 = vmatpush2.msra.mxu0 %v50
    %385 = vmatprep.subr.mxu0 0.0
    %386 = vmatpush2.msra.mxu0 %v49
    %387 = vmatprep.subr.mxu0 0.0
    %388 = vmatpush2.msra.mxu0 %v48
    %389 = vmatprep.subr.mxu0 0.0
    %390 = vmatpush2.msra.mxu0 %v47
    %391 = vmatprep.subr.mxu0 0.0
    %392 = vmatpush2.msra.mxu0 %v46
    %393 = vmatprep.subr.mxu0 0.0
    %394 = vmatpush2.msra.mxu0 %v45
    %395 = vmatprep.mubr.f32.mxu0 %v327
    %396 = vmatmul.mubr.f32.gmra.mxu0 %v326
    %v397 = vpop.f32.mrf.mxu0
    %v398 = vadd.f32 0.0, %v397
    %v399 = vpop.f32.mrf.mxu0
    %400 = vdwg.mxu0
    %401 = vmatprep.subr.mxu0 0.0
    %402 = vmatpush1.msra.mxu0 %v76
    %403 = vmatprep.subr.mxu0 0.0
    %404 = vmatpush1.msra.mxu0 %v75
    %405 = vmatprep.subr.mxu0 0.0
    %406 = vmatpush1.msra.mxu0 %v74
    %407 = vmatprep.subr.mxu0 0.0
    %408 = vmatpush1.msra.mxu0 %v73
    %409 = vmatprep.subr.mxu0 0.0
    %410 = vmatpush1.msra.mxu0 %v72
    %411 = vmatprep.subr.mxu0 0.0
    %412 = vmatpush1.msra.mxu0 %v71
    %413 = vmatprep.subr.mxu0 0.0
    %414 = vmatpush1.msra.mxu0 %v70
    %415 = vmatprep.subr.mxu0 0.0
    %416 = vmatpush1.msra.mxu0 %v69
    %417 = vmatprep.subr.mxu0 0.0
    %418 = vmatpush1.msra.mxu0 %v68
    %419 = vmatprep.subr.mxu0 0.0
    %420 = vmatpush1.msra.mxu0 %v67
    %421 = vmatprep.subr.mxu0 0.0
    %422 = vmatpush1.msra.mxu0 %v66
    %423 = vmatprep.subr.mxu0 0.0
    %424 = vmatpush1.msra.mxu0 %v65
    %425 = vmatprep.subr.mxu0 0.0
    %426 = vmatpush1.msra.mxu0 %v64
    %427 = vmatprep.subr.mxu0 0.0
    %428 = vmatpush1.msra.mxu0 %v63
    %429 = vmatprep.subr.mxu0 0.0
    %430 = vmatpush1.msra.mxu0 %v62
    %431 = vmatprep.subr.mxu0 0.0
    %432 = vmatpush1.msra.mxu0 %v61
    %433 = vmatprep.subr.mxu0 0.0
    %434 = vmatpush2.msra.mxu0 %v92
    %435 = vmatprep.subr.mxu0 0.0
    %436 = vmatpush2.msra.mxu0 %v91
    %437 = vmatprep.subr.mxu0 0.0
    %438 = vmatpush2.msra.mxu0 %v90
    %439 = vmatprep.subr.mxu0 0.0
    %440 = vmatpush2.msra.mxu0 %v89
    %441 = vmatprep.subr.mxu0 0.0
    %442 = vmatpush2.msra.mxu0 %v88
    %443 = vmatprep.subr.mxu0 0.0
    %444 = vmatpush2.msra.mxu0 %v87
    %445 = vmatprep.subr.mxu0 0.0
    %446 = vmatpush2.msra.mxu0 %v86
    %447 = vmatprep.subr.mxu0 0.0
    %448 = vmatpush2.msra.mxu0 %v85
    %449 = vmatprep.subr.mxu0 0.0
    %450 = vmatpush2.msra.mxu0 %v84
    %451 = vmatprep.subr.mxu0 0.0
    %452 = vmatpush2.msra.mxu0 %v83
    %453 = vmatprep.subr.mxu0 0.0
    %454 = vmatpush2.msra.mxu0 %v82
    %455 = vmatprep.subr.mxu0 0.0
    %456 = vmatpush2.msra.mxu0 %v81
    %457 = vmatprep.subr.mxu0 0.0
    %458 = vmatpush2.msra.mxu0 %v80
    %459 = vmatprep.subr.mxu0 0.0
    %460 = vmatpush2.msra.mxu0 %v79
    %461 = vmatprep.subr.mxu0 0.0
    %462 = vmatpush2.msra.mxu0 %v78
    %463 = vmatprep.subr.mxu0 0.0
    %464 = vmatpush2.msra.mxu0 %v77
    %465 = vmatprep.mubr.f32.mxu0 %v329
    %466 = vmatmul.mubr.f32.gmra.mxu0 %v328
    %v467 = vpop.f32.mrf.mxu0
    %v468 = vadd.f32 %v398, %v467
    %v469 = vpop.f32.mrf.mxu0
    %470 = vdwg.mxu0
    %471 = vmatprep.subr.mxu0 0.0
    %472 = vmatpush1.msra.mxu0 %v108
    %473 = vmatprep.subr.mxu0 0.0
    %474 = vmatpush1.msra.mxu0 %v107
    %475 = vmatprep.subr.mxu0 0.0
    %476 = vmatpush1.msra.mxu0 %v106
    %477 = vmatprep.subr.mxu0 0.0
    %478 = vmatpush1.msra.mxu0 %v105
    %479 = vmatprep.subr.mxu0 0.0
    %480 = vmatpush1.msra.mxu0 %v104
    %481 = vmatprep.subr.mxu0 0.0
    %482 = vmatpush1.msra.mxu0 %v103
    %483 = vmatprep.subr.mxu0 0.0
    %484 = vmatpush1.msra.mxu0 %v102
    %485 = vmatprep.subr.mxu0 0.0
    %486 = vmatpush1.msra.mxu0 %v101
    %487 = vmatprep.subr.mxu0 0.0
    %488 = vmatpush1.msra.mxu0 %v100
    %489 = vmatprep.subr.mxu0 0.0
    %490 = vmatpush1.msra.mxu0 %v99
    %491 = vmatprep.subr.mxu0 0.0
    %492 = vmatpush1.msra.mxu0 %v98
    %493 = vmatprep.subr.mxu0 0.0
    %494 = vmatpush1.msra.mxu0 %v97
    %495 = vmatprep.subr.mxu0 0.0
    %496 = vmatpush1.msra.mxu0 %v96
    %497 = vmatprep.subr.mxu0 0.0
    %498 = vmatpush1.msra.mxu0 %v95
    %499 = vmatprep.subr.mxu0 0.0
    %500 = vmatpush1.msra.mxu0 %v94
    %501 = vmatprep.subr.mxu0 0.0
    %502 = vmatpush1.msra.mxu0 %v93
    %503 = vmatprep.subr.mxu0 0.0
    %504 = vmatpush2.msra.mxu0 0.0
    %505 = vmatprep.subr.mxu0 0.0
    %506 = vmatpush2.msra.mxu0 0.0
    %507 = vmatprep.subr.mxu0 0.0
    %508 = vmatpush2.msra.mxu0 0.0
    %509 = vmatprep.subr.mxu0 0.0
    %510 = vmatpush2.msra.mxu0 0.0
    %511 = vmatprep.subr.mxu0 0.0
    %512 = vmatpush2.msra.mxu0 0.0
    %513 = vmatprep.subr.mxu0 0.0
    %514 = vmatpush2.msra.mxu0 0.0
    %515 = vmatprep.subr.mxu0 0.0
    %516 = vmatpush2.msra.mxu0 0.0
    %517 = vmatprep.subr.mxu0 0.0
    %518 = vmatpush2.msra.mxu0 0.0
    %519 = vmatprep.subr.mxu0 0.0
    %520 = vmatpush2.msra.mxu0 0.0
    %521 = vmatprep.subr.mxu0 0.0
    %522 = vmatpush2.msra.mxu0 0.0
    %523 = vmatprep.subr.mxu0 0.0
    %524 = vmatpush2.msra.mxu0 0.0
    %525 = vmatprep.subr.mxu0 0.0
    %526 = vmatpush2.msra.mxu0 0.0
    %527 = vmatprep.subr.mxu0 0.0
    %528 = vmatpush2.msra.mxu0 0.0
    %529 = vmatprep.subr.mxu0 0.0
    %530 = vmatpush2.msra.mxu0 0.0
    %531 = vmatprep.subr.mxu0 0.0
    %532 = vmatpush2.msra.mxu0 0.0
    %533 = vmatprep.subr.mxu0 0.0
    %534 = vmatpush2.msra.mxu0 0.0
    %535 = vmatprep.mubr.f32.mxu0 0.0
    %536 = vmatmul.mubr.f32.gmra.mxu0 %v330
    %v537 = vpop.f32.mrf.mxu0
    %v538 = vadd.f32 %v468, %v537
    %v539 = vpop.f32.mrf.mxu0
    %540 = vdwg.mxu0
    %541 = vst.msk [vmem:[#allocation4] sm:$0xff] %vm324, %v538
    %v542 = vmul.f32 %v24, %v24
    %v543 = vmul.f32 %v25, %v25
    %v544 = vmul.f32 %v26, %v26
    %v545 = vmul.f32 %v27, %v27
    %v546 = vmul.f32 %v28, %v28
    %547 = vmatprep.subr.mxu0 0.0
    %548 = vmatpush1.msra.mxu0 %v44
    %549 = vmatprep.subr.mxu0 0.0
    %550 = vmatpush1.msra.mxu0 %v43
    %551 = vmatprep.subr.mxu0 0.0
    %552 = vmatpush1.msra.mxu0 %v42
    %553 = vmatprep.subr.mxu0 0.0
    %554 = vmatpush1.msra.mxu0 %v41
    %555 = vmatprep.subr.mxu0 0.0
    %556 = vmatpush1.msra.mxu0 %v40
    %557 = vmatprep.subr.mxu0 0.0
    %558 = vmatpush1.msra.mxu0 %v39
    %559 = vmatprep.subr.mxu0 0.0
    %560 = vmatpush1.msra.mxu0 %v38
    %561 = vmatprep.subr.mxu0 0.0
    %562 = vmatpush1.msra.mxu0 %v37
    %563 = vmatprep.subr.mxu0 0.0
    %564 = vmatpush1.msra.mxu0 %v36
    %565 = vmatprep.subr.mxu0 0.0
    %566 = vmatpush1.msra.mxu0 %v35
    %567 = vmatprep.subr.mxu0 0.0
    %568 = vmatpush1.msra.mxu0 %v34
    %569 = vmatprep.subr.mxu0 0.0
    %570 = vmatpush1.msra.mxu0 %v33
    %571 = vmatprep.subr.mxu0 0.0
    %572 = vmatpush1.msra.mxu0 %v32
    %573 = vmatprep.subr.mxu0 0.0
    %574 = vmatpush1.msra.mxu0 %v31
    %575 = vmatprep.subr.mxu0 0.0
    %576 = vmatpush1.msra.mxu0 %v30
    %577 = vmatprep.subr.mxu0 0.0
    %578 = vmatpush1.msra.mxu0 %v29
    %579 = vmatprep.subr.mxu0 0.0
    %580 = vmatpush2.msra.mxu0 %v60
    %581 = vmatprep.subr.mxu0 0.0
    %582 = vmatpush2.msra.mxu0 %v59
    %583 = vmatprep.subr.mxu0 0.0
    %584 = vmatpush2.msra.mxu0 %v58
    %585 = vmatprep.subr.mxu0 0.0
    %586 = vmatpush2.msra.mxu0 %v57
    %587 = vmatprep.subr.mxu0 0.0
    %588 = vmatpush2.msra.mxu0 %v56
    %589 = vmatprep.subr.mxu0 0.0
    %590 = vmatpush2.msra.mxu0 %v55
    %591 = vmatprep.subr.mxu0 0.0
    %592 = vmatpush2.msra.mxu0 %v54
    %593 = vmatprep.subr.mxu0 0.0
    %594 = vmatpush2.msra.mxu0 %v53
    %595 = vmatprep.subr.mxu0 0.0
    %596 = vmatpush2.msra.mxu0 %v52
    %597 = vmatprep.subr.mxu0 0.0
    %598 = vmatpush2.msra.mxu0 %v51
    %599 = vmatprep.subr.mxu0 0.0
    %600 = vmatpush2.msra.mxu0 %v50
    %601 = vmatprep.subr.mxu0 0.0
    %602 = vmatpush2.msra.mxu0 %v49
    %603 = vmatprep.subr.mxu0 0.0
    %604 = vmatpush2.msra.mxu0 %v48
    %605 = vmatprep.subr.mxu0 0.0
    %606 = vmatpush2.msra.mxu0 %v47
    %607 = vmatprep.subr.mxu0 0.0
    %608 = vmatpush2.msra.mxu0 %v46
    %609 = vmatprep.subr.mxu0 0.0
    %610 = vmatpush2.msra.mxu0 %v45
    %611 = vmatprep.mubr.f32.mxu0 %v543
    %612 = vmatmul.mubr.f32.gmra.mxu0 %v542
    %v613 = vpop.f32.mrf.mxu0
    %v614 = vadd.f32 0.0, %v613
    %v615 = vpop.f32.mrf.mxu0
    %616 = vdwg.mxu0
    %617 = vmatprep.subr.mxu0 0.0
    %618 = vmatpush1.msra.mxu0 %v76
    %619 = vmatprep.subr.mxu0 0.0
    %620 = vmatpush1.msra.mxu0 %v75
    %621 = vmatprep.subr.mxu0 0.0
    %622 = vmatpush1.msra.mxu0 %v74
    %623 = vmatprep.subr.mxu0 0.0
    %624 = vmatpush1.msra.mxu0 %v73
    %625 = vmatprep.subr.mxu0 0.0
    %626 = vmatpush1.msra.mxu0 %v72
    %627 = vmatprep.subr.mxu0 0.0
    %628 = vmatpush1.msra.mxu0 %v71
    %629 = vmatprep.subr.mxu0 0.0
    %630 = vmatpush1.msra.mxu0 %v70
    %631 = vmatprep.subr.mxu0 0.0
    %632 = vmatpush1.msra.mxu0 %v69
    %633 = vmatprep.subr.mxu0 0.0
    %634 = vmatpush1.msra.mxu0 %v68
    %635 = vmatprep.subr.mxu0 0.0
    %636 = vmatpush1.msra.mxu0 %v67
    %637 = vmatprep.subr.mxu0 0.0
    %638 = vmatpush1.msra.mxu0 %v66
    %639 = vmatprep.subr.mxu0 0.0
    %640 = vmatpush1.msra.mxu0 %v65
    %641 = vmatprep.subr.mxu0 0.0
    %642 = vmatpush1.msra.mxu0 %v64
    %643 = vmatprep.subr.mxu0 0.0
    %644 = vmatpush1.msra.mxu0 %v63
    %645 = vmatprep.subr.mxu0 0.0
    %646 = vmatpush1.msra.mxu0 %v62
    %647 = vmatprep.subr.mxu0 0.0
    %648 = vmatpush1.msra.mxu0 %v61
    %649 = vmatprep.subr.mxu0 0.0
    %650 = vmatpush2.msra.mxu0 %v92
    %651 = vmatprep.subr.mxu0 0.0
    %652 = vmatpush2.msra.mxu0 %v91
    %653 = vmatprep.subr.mxu0 0.0
    %654 = vmatpush2.msra.mxu0 %v90
    %655 = vmatprep.subr.mxu0 0.0
    %656 = vmatpush2.msra.mxu0 %v89
    %657 = vmatprep.subr.mxu0 0.0
    %658 = vmatpush2.msra.mxu0 %v88
    %659 = vmatprep.subr.mxu0 0.0
    %660 = vmatpush2.msra.mxu0 %v87
    %661 = vmatprep.subr.mxu0 0.0
    %662 = vmatpush2.msra.mxu0 %v86
    %663 = vmatprep.subr.mxu0 0.0
    %664 = vmatpush2.msra.mxu0 %v85
    %665 = vmatprep.subr.mxu0 0.0
    %666 = vmatpush2.msra.mxu0 %v84
    %667 = vmatprep.subr.mxu0 0.0
    %668 = vmatpush2.msra.mxu0 %v83
    %669 = vmatprep.subr.mxu0 0.0
    %670 = vmatpush2.msra.mxu0 %v82
    %671 = vmatprep.subr.mxu0 0.0
    %672 = vmatpush2.msra.mxu0 %v81
    %673 = vmatprep.subr.mxu0 0.0
    %674 = vmatpush2.msra.mxu0 %v80
    %675 = vmatprep.subr.mxu0 0.0
    %676 = vmatpush2.msra.mxu0 %v79
    %677 = vmatprep.subr.mxu0 0.0
    %678 = vmatpush2.msra.mxu0 %v78
    %679 = vmatprep.subr.mxu0 0.0
    %680 = vmatpush2.msra.mxu0 %v77
    %681 = vmatprep.mubr.f32.mxu0 %v545
    %682 = vmatmul.mubr.f32.gmra.mxu0 %v544
    %v683 = vpop.f32.mrf.mxu0
    %v684 = vadd.f32 %v614, %v683
    %v685 = vpop.f32.mrf.mxu0
    %686 = vdwg.mxu0
    %687 = vmatprep.subr.mxu0 0.0
    %688 = vmatpush1.msra.mxu0 %v108
    %689 = vmatprep.subr.mxu0 0.0
    %690 = vmatpush1.msra.mxu0 %v107
    %691 = vmatprep.subr.mxu0 0.0
    %692 = vmatpush1.msra.mxu0 %v106
    %693 = vmatprep.subr.mxu0 0.0
    %694 = vmatpush1.msra.mxu0 %v105
    %695 = vmatprep.subr.mxu0 0.0
    %696 = vmatpush1.msra.mxu0 %v104
    %697 = vmatprep.subr.mxu0 0.0
    %698 = vmatpush1.msra.mxu0 %v103
    %699 = vmatprep.subr.mxu0 0.0
    %700 = vmatpush1.msra.mxu0 %v102
    %701 = vmatprep.subr.mxu0 0.0
    %702 = vmatpush1.msra.mxu0 %v101
    %703 = vmatprep.subr.mxu0 0.0
    %704 = vmatpush1.msra.mxu0 %v100
    %705 = vmatprep.subr.mxu0 0.0
    %706 = vmatpush1.msra.mxu0 %v99
    %707 = vmatprep.subr.mxu0 0.0
    %708 = vmatpush1.msra.mxu0 %v98
    %709 = vmatprep.subr.mxu0 0.0
    %710 = vmatpush1.msra.mxu0 %v97
    %711 = vmatprep.subr.mxu0 0.0
    %712 = vmatpush1.msra.mxu0 %v96
    %713 = vmatprep.subr.mxu0 0.0
    %714 = vmatpush1.msra.mxu0 %v95
    %715 = vmatprep.subr.mxu0 0.0
    %716 = vmatpush1.msra.mxu0 %v94
    %717 = vmatprep.subr.mxu0 0.0
    %718 = vmatpush1.msra.mxu0 %v93
    %719 = vmatprep.subr.mxu0 0.0
    %720 = vmatpush2.msra.mxu0 0.0
    %721 = vmatprep.subr.mxu0 0.0
    %722 = vmatpush2.msra.mxu0 0.0
    %723 = vmatprep.subr.mxu0 0.0
    %724 = vmatpush2.msra.mxu0 0.0
    %725 = vmatprep.subr.mxu0 0.0
    %726 = vmatpush2.msra.mxu0 0.0
    %727 = vmatprep.subr.mxu0 0.0
    %728 = vmatpush2.msra.mxu0 0.0
    %729 = vmatprep.subr.mxu0 0.0
    %730 = vmatpush2.msra.mxu0 0.0
    %731 = vmatprep.subr.mxu0 0.0
    %732 = vmatpush2.msra.mxu0 0.0
    %733 = vmatprep.subr.mxu0 0.0
    %734 = vmatpush2.msra.mxu0 0.0
    %735 = vmatprep.subr.mxu0 0.0
    %736 = vmatpush2.msra.mxu0 0.0
    %737 = vmatprep.subr.mxu0 0.0
    %738 = vmatpush2.msra.mxu0 0.0
    %739 = vmatprep.subr.mxu0 0.0
    %740 = vmatpush2.msra.mxu0 0.0
    %741 = vmatprep.subr.mxu0 0.0
    %742 = vmatpush2.msra.mxu0 0.0
    %743 = vmatprep.subr.mxu0 0.0
    %744 = vmatpush2.msra.mxu0 0.0
    %745 = vmatprep.subr.mxu0 0.0
    %746 = vmatpush2.msra.mxu0 0.0
    %747 = vmatprep.subr.mxu0 0.0
    %748 = vmatpush2.msra.mxu0 0.0
    %749 = vmatprep.subr.mxu0 0.0
    %750 = vmatpush2.msra.mxu0 0.0
    %751 = vmatprep.mubr.f32.mxu0 0.0
    %752 = vmatmul.mubr.f32.gmra.mxu0 %v546
    %v753 = vpop.f32.mrf.mxu0
    %v754 = vadd.f32 %v684, %v753
    %v755 = vpop.f32.mrf.mxu0
    %756 = vdwg.mxu0
    %757 = vst.msk [vmem:[#allocation6] sm:$0xff] %vm324, %v754
    // Predicated region
    $region14: #{tpu_custom_call.1} parent=1 // pred_check
      _
    $region15: #{tpu_custom_call.1} parent=1 // pred_check_branch
      %759 = sbr.rel (0) target = $region17
    $region16: #{tpu_custom_call.1} parent=1 // pred_region
      %s761 = ssub.s32 128, 128
      %762 = vsyncadd [#allocation3], %s761
      %s764 = sshll.u32 [#allocation2], 4
      %s765 = int_to_ptr.vmem [resolvable:$true] %s764
      %767 = dma.vmem_to_hbm [thread:$0]  %s765, 128, %s3, [#allocation3]
    $region17: #{tpu_custom_call.1} parent=1 // pred_fallthru
      _
    // Predicated region
    $region18: #{tpu_custom_call.1} parent=1 // pred_check
      _
    $region19: #{tpu_custom_call.1} parent=1 // pred_check_branch
      %769 = sbr.rel (0) target = $region21
    $region20: #{tpu_custom_call.1} parent=1 // pred_region
      %s771 = ssub.s32 128, 128
      %772 = vsyncadd [#allocation5], %s771
      %s774 = sshll.u32 [#allocation4], 4
      %s775 = int_to_ptr.vmem [resolvable:$true] %s774
      %777 = dma.vmem_to_hbm [thread:$0]  %s775, 128, %s4, [#allocation5]
    $region21: #{tpu_custom_call.1} parent=1 // pred_fallthru
      _
    // Predicated region
    $region22: #{tpu_custom_call.1} parent=1 // pred_check
      _
    $region23: #{tpu_custom_call.1} parent=1 // pred_check_branch
      %779 = sbr.rel (0) target = $region25
    $region24: #{tpu_custom_call.1} parent=1 // pred_region
      %s781 = ssub.s32 128, 128
      %782 = vsyncadd [#allocation5], %s781
      %s784 = sshll.u32 [#allocation6], 4
      %s785 = int_to_ptr.vmem [resolvable:$true] %s784
      %787 = dma.vmem_to_hbm [thread:$0]  %s785, 128, %s5, [#allocation5]
    $region25: #{tpu_custom_call.1} parent=1 // pred_fallthru
      _
    // Predicated region
    $region26: #{tpu_custom_call.1} parent=1 // pred_check
      _
    $region27: #{tpu_custom_call.1} parent=1 // pred_check_branch
      %789 = sbr.rel (0) target = $region29
    $region28: #{tpu_custom_call.1} parent=1 // pred_region
      %790 = dma.done [#allocation3], 128
    $region29: #{tpu_custom_call.1} parent=1 // pred_fallthru
      _
    // Predicated region
    $region30: #{tpu_custom_call.1} parent=1 // pred_check
      _
    $region31: #{tpu_custom_call.1} parent=1 // pred_check_branch
      %792 = sbr.rel (0) target = $region33
    $region32: #{tpu_custom_call.1} parent=1 // pred_region
      %793 = dma.done [#allocation5], 128
    $region33: #{tpu_custom_call.1} parent=1 // pred_fallthru
      _
    // Predicated region
    $region34: #{tpu_custom_call.1} parent=1 // pred_check
      _
    $region35: #{tpu_custom_call.1} parent=1 // pred_check_branch
      %795 = sbr.rel (0) target = $region37
    $region36: #{tpu_custom_call.1} parent=1 // pred_region
      %796 = dma.done [#allocation5], 128
    $region37: #{tpu_custom_call.1} parent=1 // pred_fallthru
      _
    %797 = vsyncpa [#allocation3], 1
    %798 = vsyncpa [#allocation5], 1

</llo_original>
